<compile_context>
chip_gen: v7x
topology: tpu7x:2x2x1
jax: 0.10.0
libtpu: 0.0.40
codegen_flags: <defaults>
</compile_context>

<pallas_src>
import functools

import jax
import jax.numpy as jnp
from jax.experimental import pallas as pl
from jax.experimental.pallas import tpu as pltpu


_LANE = 128
_SUBLANE = 8
_MAX_TILE_COLS = 16384          # keeps the unrolled lane fold at <= 128 vreg adds
_MIN_SPLIT_BYTES = 1 << 20      # only dual-tile a single-tile grid for non-trivial inputs


def _round_up(x, m):
    return ((x + m - 1) // m) * m


def _cdiv(a, b):
    return -(-a // b)


def _vmem_budget():
    """(vmem_limit_bytes, per-tile input-byte budget), generation aware."""
    cap = 64 * 1024 * 1024                      # conservative default (v7x per-TC VMEM)
    try:
        info = pltpu.get_tpu_info()
        cap_attr = getattr(info, "vmem_capacity_bytes", None)
        if cap_attr:
            cap = int(cap_attr)
    except Exception:
        pass
    # v7x (64 MiB physical) -> ~48 MiB scoped limit; v5e/v6e (128 MiB) -> 64 MiB.
    vmem_limit = int(min(64 * 1024 * 1024, (cap * 3) // 4))
    # Inputs are double buffered -> keep 2 * tile within ~2/3 of the limit.
    tile_budget = vmem_limit // 3
    return vmem_limit, tile_budget


def _accuracy_partial_kernel(thr_ref, y_true_ref, y_pred_ref, out_ref, *,
                             tile_rows, tile_cols, n_rows, n_cols,
                             mask_rows, mask_cols):
    thr = thr_ref[0]
    if jnp.issubdtype(y_pred_ref.dtype, jnp.floating):
        thr = thr.astype(y_pred_ref.dtype)          # scalar cast; compare in native dtype
    pred_pos = y_pred_ref[...] > thr                 # bool (tile_rows, tile_cols)

    truth = y_true_ref[...]
    # Exactly `(preds.int() == y_true)`: 0/1 preds are exactly representable in any
    # dtype, so compare in y_true's dtype.  Sub-32-bit integer / bool labels are
    # widened to int32 (robust, cheap) while float labels stay float (so e.g. a 0.7
    # label never "matches", same as PyTorch's promoted comparison).
    if truth.dtype == jnp.bool_ or (jnp.issubdtype(truth.dtype, jnp.integer)
                                    and truth.dtype.itemsize < 4):
        truth = truth.astype(jnp.int32)
    matches = truth == pred_pos.astype(truth.dtype)

    if mask_rows:   # static flag: only traced when the grid over-covers rows
        r0 = pl.program_id(0) * tile_rows
        rows = r0 + jax.lax.broadcasted_iota(jnp.int32, matches.shape, 0)
        matches = jnp.logical_and(matches, rows < n_rows)
    if mask_cols:   # static flag: only traced when the grid over-covers columns
        c0 = pl.program_id(1) * tile_cols
        cols = c0 + jax.lax.broadcasted_iota(jnp.int32, matches.shape, 1)
        matches = jnp.logical_and(matches, cols < n_cols)

    m = matches.astype(jnp.int32)
    # Sublane fold: (tile_rows, tile_cols) -> (8, tile_cols), plain vreg adds.
    part = jnp.sum(m.reshape(tile_rows // _SUBLANE, _SUBLANE, tile_cols), axis=0)
    # Lane fold: (8, tile_cols) -> (8, 128) with lane-block-aligned vreg adds (no XLU).
    folded = part[:, :_LANE]
    for b in range(1, tile_cols // _LANE):
        folded = folded + part[:, b * _LANE:(b + 1) * _LANE]
    out_ref[0, 0] = folded


def accuracy(y_true, y_pred, threshold=0.5, max_tile_bytes=None):
    """Pallas equivalent of Accuracy(threshold).forward(y_true, y_pred)."""
    assert y_true.shape == y_pred.shape, (y_true.shape, y_pred.shape)
    batch_n = y_pred.shape[0] if y_pred.ndim >= 1 else 1    # PyTorch: len(preds)

    # ---- Layout: present a lane-dense 2-D view (all reshapes are free: contiguous
    #      row-major, element order preserved -> XLA bitcast, no HBM copy). ----
    total = y_pred.size
    if y_pred.ndim == 2:
        rows, cols = y_pred.shape
    else:
        rows, cols = batch_n, total // max(batch_n, 1)
        y_true = y_true.reshape(rows, cols)
        y_pred = y_pred.reshape(rows, cols)
    if cols % _LANE != 0 and total % _LANE == 0:
        # Lane-densify narrow / ragged feature dims: full 128-lane vregs.
        rows, cols = total // _LANE, _LANE
        y_true = y_true.reshape(rows, cols)
        y_pred = y_pred.reshape(rows, cols)

    pred_itemsize = jnp.dtype(y_pred.dtype).itemsize
    true_itemsize = jnp.dtype(y_true.dtype).itemsize
    elem_bytes = pred_itemsize + true_itemsize

    vmem_limit, tile_budget = _vmem_budget()
    if max_tile_bytes is not None:
        tile_budget = int(max_tile_bytes)

    cols_pad = _round_up(cols, _LANE)

    # ---- Column tiling: only when a minimum-height, full-width tile would not fit
    #      the budget (footprints use *padded* lane sizes). ----
    tile_cols = min(cols_pad, _MAX_TILE_COLS)
    if _SUBLANE * tile_cols * elem_bytes > tile_budget:
        tile_cols = max(_LANE,
                        (tile_budget // (_SUBLANE * elem_bytes)) // _LANE * _LANE)
    num_col_tiles = _cdiv(cols, tile_cols)

    # ---- Row tiling: as tall as the budget allows (amortizes the ~0.35 us per-step
    #      overhead); multiple of 8, and of 32 when large (packed int8/bool labels). ----
    per_row_bytes = tile_cols * elem_bytes
    max_rows = _round_up(rows, _SUBLANE)
    tile_rows = min(max_rows, max(_SUBLANE, tile_budget // per_row_bytes))
    tile_rows = max(_SUBLANE, (tile_rows // _SUBLANE) * _SUBLANE)
    if tile_rows >= 64:
        tile_rows = (tile_rows // 32) * 32
    num_row_tiles = _cdiv(rows, tile_rows)

    # ---- v7x megacore: make a non-trivial input span >= 2 tiles so the "parallel"
    #      axis can shard across both TensorCores (harmless on single-TC chips). ----
    if (num_row_tiles * num_col_tiles == 1 and rows > _SUBLANE
            and rows * cols_pad * elem_bytes >= _MIN_SPLIT_BYTES):
        tile_rows = max(_SUBLANE, _round_up(_cdiv(rows, 2), _SUBLANE))
        num_row_tiles = _cdiv(rows, tile_rows)

    mask_rows = (num_row_tiles * tile_rows) != rows
    mask_cols = (num_col_tiles * tile_cols) != cols

    kernel = functools.partial(
        _accuracy_partial_kernel,
        tile_rows=int(tile_rows), tile_cols=int(tile_cols),
        n_rows=int(rows), n_cols=int(cols),
        mask_rows=bool(mask_rows), mask_cols=bool(mask_cols),
    )

    thr = jnp.asarray([threshold], dtype=jnp.float32)   # SMEM scalar, no recompile per value

    partials = pl.pallas_call(
        kernel,
        out_shape=jax.ShapeDtypeStruct(
            (num_row_tiles, num_col_tiles, _SUBLANE, _LANE), jnp.int32),
        grid=(num_row_tiles, num_col_tiles),
        in_specs=[
            pl.BlockSpec(memory_space=pltpu.MemorySpace.SMEM),           # threshold
            pl.BlockSpec((tile_rows, tile_cols), lambda i, j: (i, j)),   # y_true
            pl.BlockSpec((tile_rows, tile_cols), lambda i, j: (i, j)),   # y_pred
        ],
        out_specs=pl.BlockSpec((1, 1, _SUBLANE, _LANE), lambda i, j: (i, j, 0, 0)),
        compiler_params=pltpu.CompilerParams(
            dimension_semantics=("parallel", "parallel"),
            vmem_limit_bytes=vmem_limit,
        ),
    )(thr, y_true, y_pred)

    # Exact integer count, then PyTorch's `.float() / len(preds)`.
    return jnp.sum(partials).astype(jnp.float32) / jnp.float32(batch_n)


if __name__ == "__main__":
    def check(y_true, y_pred, threshold=0.5, **kw):
        out = jax.block_until_ready(accuracy(y_true, y_pred, threshold, **kw))
        preds = (y_pred > threshold).astype(jnp.int32)
        ref = (preds == y_true).sum().astype(jnp.float32) / y_pred.shape[0]
        assert jnp.allclose(out, ref, rtol=0.0, atol=1e-6), (out, ref)
        return out

    k1, k2, k3, k4, k5, k6 = jax.random.split(jax.random.PRNGKey(0), 6)

    # Case 1 (primary): batch=40, features=96 -> free lane-dense reshape to (30, 128),
    # grid over-cover + in-kernel row mask, narrow int8 labels (less HBM traffic).
    y_pred1 = jax.random.uniform(k1, (40, 96), dtype=jnp.float32)
    y_true1 = jax.random.bernoulli(k2, 0.5, (40, 96)).astype(jnp.int8)
    check(y_true1, y_pred1, threshold=0.5)

    # Case 2: multi-row-tile grid (tiny tile-budget override), float32 labels.
    y_pred2 = jax.random.uniform(k3, (64, 256), dtype=jnp.float32)
    y_true2 = jax.random.bernoulli(k4, 0.5, (64, 256)).astype(jnp.float32)
    check(y_true2, y_pred2, max_tile_bytes=64 * 1024)

    # Case 3: 2-D (rows x cols) grid via an even smaller budget, int32 labels.
    y_pred3 = jax.random.uniform(k5, (16, 512), dtype=jnp.float32)
    y_true3 = jax.random.bernoulli(k6, 0.5, (16, 512)).astype(jnp.int32)
    check(y_true3, y_pred3, max_tile_bytes=16 * 1024)

    print("KERNEL_OK")
</pallas_src>

<mosaic_0001>
module attributes {stable_mosaic.version = 11 : i64} {
  func.func @_accuracy_partial_kernel(%arg0: i32, %arg1: i32, %arg2: memref<1xf32, #tpu.memory_space<smem>>, %arg3: memref<32x128xi8, #tpu.memory_space<vmem>>, %arg4: memref<32x128xf32, #tpu.memory_space<vmem>>, %arg5: memref<1x1x8x128xi32, #tpu.memory_space<vmem>>) attributes {dimension_semantics = [#tpu.dimension_semantics<parallel>, #tpu.dimension_semantics<parallel>], iteration_bounds = array<i64: 1, 1>, scalar_prefetch = 0 : i64, scratch_operands = 0 : i64, tpu.core_type = #tpu.core_type<tc>, window_params = [{transform_indices = @transform_0, window_bounds = array<i64: 1>}, {transform_indices = @transform_1, window_bounds = array<i64: 32, 128>}, {transform_indices = @transform_2, window_bounds = array<i64: 32, 128>}, {transform_indices = @transform_3, window_bounds = array<i64: 1, 1, 8, 128>}]} {
    %c0 = arith.constant 0 : index
    %0 = memref.load %arg2[%c0] : memref<1xf32, #tpu.memory_space<smem>>
    %c0_0 = arith.constant 0 : index
    %c0_1 = arith.constant 0 : index
    %1 = vector.load %arg4[%c0_0, %c0_1] : memref<32x128xf32, #tpu.memory_space<vmem>>, vector<32x128xf32>
    %2 = vector.broadcast %0 : f32 to vector<32x128xf32>
    %3 = arith.cmpf ogt, %1, %2 : vector<32x128xf32>
    %c0_2 = arith.constant 0 : index
    %c0_3 = arith.constant 0 : index
    %4 = vector.load %arg3[%c0_2, %c0_3] : memref<32x128xi8, #tpu.memory_space<vmem>>, vector<32x128xi8>
    %5 = arith.extsi %4 : vector<32x128xi8> to vector<32x128xi32>
    %6 = arith.extui %3 : vector<32x128xi1> to vector<32x128xi32>
    %7 = arith.cmpi eq, %5, %6 : vector<32x128xi32>
    %c32_i32 = arith.constant 32 : i32
    %8 = arith.muli %arg0, %c32_i32 : i32
    %9 = tpu.iota {dimensions = array<i32: 0>} : vector<32x128xi32>
    %10 = vector.broadcast %8 : i32 to vector<32x128xi32>
    %11 = arith.addi %10, %9 : vector<32x128xi32>
    %c30_i32 = arith.constant 30 : i32
    %12 = vector.broadcast %c30_i32 : i32 to vector<32x128xi32>
    %13 = arith.cmpi slt, %11, %12 : vector<32x128xi32>
    %14 = arith.andi %7, %13 : vector<32x128xi1>
    %15 = arith.extui %14 : vector<32x128xi1> to vector<32x128xi32>
    %16 = vector.shape_cast %15 : vector<32x128xi32> to vector<4x8x128xi32>
    %cst = arith.constant dense<0> : vector<8x128xi32>
    %17 = vector.multi_reduction <add>, %16, %cst [0] : vector<4x8x128xi32> to vector<8x128xi32>
    %c0_4 = arith.constant 0 : index
    %c0_5 = arith.constant 0 : index
    %c0_6 = arith.constant 0 : index
    %c0_7 = arith.constant 0 : index
    %18 = vector.load %arg5[%c0_4, %c0_5, %c0_6, %c0_7] : memref<1x1x8x128xi32, #tpu.memory_space<vmem>>, vector<1x1x8x128xi32>
    %19 = vector.shape_cast %18 : vector<1x1x8x128xi32> to vector<8x128xi32>
    %20 = vector.shape_cast %17 : vector<8x128xi32> to vector<1x1x8x128xi32>
    tpu.vector_store %arg5[%c0_4, %c0_5, %c0_6, %c0_7], %20 {strides = array<i32>} : memref<1x1x8x128xi32, #tpu.memory_space<vmem>>, vector<1x1x8x128xi32>,
    return
  }
  func.func @transform_0(%arg0: i32, %arg1: i32) -> i32 {
    %c0_i32 = arith.constant 0 : i32
    %c0_i32_0 = arith.constant 0 : i32
    return %c0_i32 : i32
  }
  func.func @transform_1(%arg0: i32, %arg1: i32) -> (i32, i32) {
    %c0_i32 = arith.constant 0 : i32
    return %arg0, %arg1 : i32, i32
  }
  func.func @transform_2(%arg0: i32, %arg1: i32) -> (i32, i32) {
    %c0_i32 = arith.constant 0 : i32
    return %arg0, %arg1 : i32, i32
  }
  func.func @transform_3(%arg0: i32, %arg1: i32) -> (i32, i32, i32, i32) {
    %c0_i32 = arith.constant 0 : i32
    %c0_i32_0 = arith.constant 0 : i32
    %c0_i32_1 = arith.constant 0 : i32
    return %arg0, %arg1, %c0_i32, %c0_i32_0 : i32, i32, i32, i32
  }
}

</mosaic_0001>

<llo_original>
// kernel: tpu_custom_call.1
$region0: #{tpu_custom_call.1}
  #allocation0 [shape = 'u32[]', space=smem, size = 0x4, offset = 0x4, fixed_abs, tag = 'smem constant byte address 0x4 - core index']
  #allocation1 [shape = 'u32[144,128]{1,0:T(1,128)}', space=vmem, size = 0x12000, scoped, tag = 'internal scratch']
  #allocation2 [shape = 'f32[1]{0:T(128)S(6)}', space=smem, size = 0x200, scoped, tag = 'scoped memory for tpu_custom_call.1']
  %s0 = inlined_call_operand.<no memory space> [shape: f32[1], index: 0, kind: input, shape index: {}]
  %s1 = inlined_call_operand.hbm [shape: s8[30,128], index: 1, kind: input, shape index: {}]
  %s2 = inlined_call_operand.hbm [shape: f32[30,128], index: 2, kind: input, shape index: {}]
  %s3 = inlined_call_operand.hbm [shape: s32[1,1,8,128], index: 3, kind: output, shape index: {}]
  %s4 = sld [smem:[#allocation0]]
  $region30: #{tpu_custom_call.1} parent=0
    _
  %s6 = ssub.s32 1, %s4
  %s7 = scalar_select 0, %s6, %s4
  %8 = sst [smem:[#allocation2]] %s0
  $region1: #{tpu_custom_call.1} parent=0
    #allocation3 [shape = 'u8[4096]{0}', space=vmem, size = 0x1000, scoped, tag = 'input window, operand 1, single buffered']
    #allocation4 [shape = 's32[1]{0}', space=sflag, size = 0x4, scoped, tag = 'scoped memory for tpu_custom_call.1']
    #allocation5 [shape = 's32[1]{0}', space=sflag, size = 0x4, scoped, tag = 'scoped memory for tpu_custom_call.1']
    #allocation6 [shape = 'u8[16384]{0}', space=vmem, size = 0x4000, scoped, tag = 'input window, operand 2, single buffered']
    #allocation7 [shape = 's32[1]{0}', space=sflag, size = 0x4, scoped, tag = 'scoped memory for tpu_custom_call.1']
    #allocation8 [shape = 'u8[4096]{0}', space=vmem, size = 0x1000, scoped, tag = 'output window, operand 0, single buffered']
    %9 = vsyncpa [#allocation4], 0
    %10 = vsyncpa [#allocation7], 0
    %11 = vsyncpa [#allocation5], 0
    // Predicated region
    $region2: #{tpu_custom_call.1} parent=1 // pred_check
      _
    $region3: #{tpu_custom_call.1} parent=1 // pred_check_branch
      %13 = sbr.rel (0) target = $region5
    $region4: #{tpu_custom_call.1} parent=1 // pred_region
      _
    $region5: #{tpu_custom_call.1} parent=1 // pred_fallthru
      _
    // Predicated region
    $region6: #{tpu_custom_call.1} parent=1 // pred_check
      _
    $region7: #{tpu_custom_call.1} parent=1 // pred_check_branch
      %15 = sbr.rel (0) target = $region9
    $region8: #{tpu_custom_call.1} parent=1 // pred_region
      %s17 = ssub.s32 128, 128
      %18 = vsyncadd [#allocation4], %s17
      %s19 = sshll.u32 [#allocation3], 4
      %s20 = int_to_ptr.vmem [resolvable:$true] %s19
      %25 = dma.hbm_to_vmem [thread:$0]  %s1, 128, %s20, [#allocation4], 32, 32, 2
    $region9: #{tpu_custom_call.1} parent=1 // pred_fallthru
      _
    // Predicated region
    $region10: #{tpu_custom_call.1} parent=1 // pred_check
      _
    $region11: #{tpu_custom_call.1} parent=1 // pred_check_branch
      %27 = sbr.rel (0) target = $region13
    $region12: #{tpu_custom_call.1} parent=1 // pred_region
      %s29 = ssub.s32 512, 512
      %30 = vsyncadd [#allocation7], %s29
      %s31 = sshll.u32 [#allocation6], 4
      %s32 = int_to_ptr.vmem [resolvable:$true] %s31
      %37 = dma.hbm_to_vmem [thread:$0]  %s2, 512, %s32, [#allocation7], 128, 128, 8
    $region13: #{tpu_custom_call.1} parent=1 // pred_fallthru
      _
    // Predicated region
    $region14: #{tpu_custom_call.1} parent=1 // pred_check
      _
    $region15: #{tpu_custom_call.1} parent=1 // pred_check_branch
      %39 = sbr.rel (0) target = $region17
    $region16: #{tpu_custom_call.1} parent=1 // pred_region
      %40 = dma.done [#allocation4], 128
    $region17: #{tpu_custom_call.1} parent=1 // pred_fallthru
      _
    // Predicated region
    $region18: #{tpu_custom_call.1} parent=1 // pred_check
      _
    $region19: #{tpu_custom_call.1} parent=1 // pred_check_branch
      %42 = sbr.rel (0) target = $region21
    $region20: #{tpu_custom_call.1} parent=1 // pred_region
      %43 = dma.done [#allocation7], 512
    $region21: #{tpu_custom_call.1} parent=1 // pred_fallthru
      _
    %s44 = sld [smem:[#allocation2]]
    %v45 = vld [vmem:[#allocation6] sm:$0xff]
    %v46 = vld [vmem:[#allocation6 + $0x8] sm:$0xff]
    %v47 = vld [vmem:[#allocation6 + $0x10] sm:$0xff]
    %v48 = vld [vmem:[#allocation6 + $0x18] sm:$0xff]
    %v49 = vstv %s44
    %vm50 = vcmp.gt.f32.partialorder %v45, %v49
    %vm51 = vcmp.gt.f32.partialorder %v46, %v49
    %vm52 = vcmp.gt.f32.partialorder %v47, %v49
    %vm53 = vcmp.gt.f32.partialorder %v48, %v49
    %v54 = vld [vmem:[#allocation3] sm:$0x3]
    %v55 = vld [vmem:[#allocation3 + $0x2] sm:$0x3]
    %v56 = vld [vmem:[#allocation3 + $0x4] sm:$0x3]
    %v57 = vld [vmem:[#allocation3 + $0x6] sm:$0x3]
    %v58 = vunpack.c.0.s8 %v54
    %v59 = vunpack.c.0.s8 %v55
    %v60 = vunpack.c.0.s8 %v56
    %v61 = vunpack.c.0.s8 %v57
    %v62 = vsel %vm50, 1, 0
    %v63 = vsel %vm51, 1, 0
    %v64 = vsel %vm52, 1, 0
    %v65 = vsel %vm53, 1, 0
    %vm66 = vcmp.eq.s32.totalorder %v58, %v62
    %vm67 = vcmp.eq.s32.totalorder %v59, %v63
    %vm68 = vcmp.eq.s32.totalorder %v60, %v64
    %vm69 = vcmp.eq.s32.totalorder %v61, %v65
    %s70 = smul.u32 0, 32
    %v71 = vlaneseq
    %v72 = vshrl.u32 %v71, 7
    %v73 = vadd.s32 %v72, 8
    %v74 = vadd.s32 %v72, 16
    %v75 = vadd.s32 %v72, 24
    %v76 = vstv %s70
    %v77 = vadd.s32 %v76, %v72
    %v78 = vadd.s32 %v76, %v73
    %v79 = vadd.s32 %v76, %v74
    %v80 = vadd.s32 %v76, %v75
    %vm81 = vcmp.lt.s32.totalorder %v77, 30
    %vm82 = vcmp.lt.s32.totalorder %v78, 30
    %vm83 = vcmp.lt.s32.totalorder %v79, 30
    %vm84 = vcmp.lt.s32.totalorder %v80, 30
    %vm85 = vmand %vm66, %vm81
    %vm86 = vmand %vm67, %vm82
    %vm87 = vmand %vm68, %vm83
    %vm88 = vmand %vm69, %vm84
    %v89 = vsel %vm85, 1, 0
    %v90 = vsel %vm86, 1, 0
    %v91 = vsel %vm87, 1, 0
    %v92 = vsel %vm88, 1, 0
    %v93 = vadd.s32 %v89, %v90
    %v94 = vadd.s32 %v91, %v92
    %v95 = vadd.s32 %v93, %v94
    %96 = vst [vmem:[#allocation8] sm:$0xff] %v95
    // Predicated region
    $region22: #{tpu_custom_call.1} parent=1 // pred_check
      _
    $region23: #{tpu_custom_call.1} parent=1 // pred_check_branch
      %98 = sbr.rel (0) target = $region25
    $region24: #{tpu_custom_call.1} parent=1 // pred_region
      %s100 = ssub.s32 128, 128
      %101 = vsyncadd [#allocation5], %s100
      %s103 = sshll.u32 [#allocation8], 4
      %s104 = int_to_ptr.vmem [resolvable:$true] %s103
      %106 = dma.vmem_to_hbm [thread:$0]  %s104, 128, %s3, [#allocation5]
    $region25: #{tpu_custom_call.1} parent=1 // pred_fallthru
      _
    // Predicated region
    $region26: #{tpu_custom_call.1} parent=1 // pred_check
      _
    $region27: #{tpu_custom_call.1} parent=1 // pred_check_branch
      %108 = sbr.rel (0) target = $region29
    $region28: #{tpu_custom_call.1} parent=1 // pred_region
      %109 = dma.done [#allocation5], 128
    $region29: #{tpu_custom_call.1} parent=1 // pred_fallthru
      _
    %110 = vsyncpa [#allocation4], 1
    %111 = vsyncpa [#allocation7], 1
    %112 = vsyncpa [#allocation5], 1

</llo_original>
